<compile_context>
chip_gen: v7x
topology: tpu7x:2x2x1
jax: 0.10.0
libtpu: 0.0.40
codegen_flags: <defaults>
</compile_context>

<pallas_src>
import jax
import jax.numpy as jnp
from jax.experimental import pallas as pl
from jax.experimental.pallas import tpu as pltpu


def _policy_kernel_lanes(xT_ref, w1t_ref, b1_ref, w2t_ref, b2_ref, outT_ref):
    """Policy forward in batch-on-lanes layout.

    xT_ref:   (state_dim, TB)    -- batch on the lane axis
    w1t_ref:  (h_size, state_dim)
    b1_ref:   (h_size, 1)        -- column bias, broadcast over lanes
    w2t_ref:  (action_dim, h_size)
    b2_ref:   (action_dim, 1)
    outT_ref: (action_dim, TB)
    """
    xT = xT_ref[...]

    # Hidden layer: Linear + ReLU  -> (h_size, TB)
    h = jnp.dot(w1t_ref[...], xT, preferred_element_type=jnp.float32) + b1_ref[...]
    h = jnp.maximum(h, 0.0)

    # Output layer: Linear -> (action_dim, TB)
    logits = jnp.dot(w2t_ref[...], h, preferred_element_type=jnp.float32) + b2_ref[...]

    # Softmax over the action axis (sublanes), numerically stable.
    m = jnp.max(logits, axis=0, keepdims=True)
    e = jnp.exp(logits - m)
    denom = jnp.sum(e, axis=0, keepdims=True)
    # EUP approximate reciprocal instead of a VALU divide sequence.
    outT_ref[...] = e * pl.reciprocal(denom, approx=True)


def policy_forward(x, w1, b1, w2, b2, *, batch_tile=512):
    """softmax(relu(x @ w1 + b1) @ w2 + b2, axis=1) as a Pallas TPU kernel.

    x:  (B, state_dim)
    w1: (state_dim, h_size),  b1: (1, h_size)
    w2: (h_size, action_dim), b2: (1, action_dim)
    Returns probs of shape (B, action_dim), float32.
    """
    assert batch_tile % 128 == 0, "batch_tile must be a multiple of 128 lanes"
    B, state_dim = x.shape
    h_size = w1.shape[1]
    action_dim = w2.shape[1]

    # Re-layout once in the wrapper: batch on lanes, weights pre-transposed,
    # biases as column vectors (single stride-0 broadcast inside the kernel).
    xT = jnp.asarray(x, jnp.float32).T          # (state_dim, B)
    w1t = jnp.asarray(w1, jnp.float32).T        # (h_size, state_dim)
    w2t = jnp.asarray(w2, jnp.float32).T        # (action_dim, h_size)
    b1c = jnp.asarray(b1, jnp.float32).reshape(h_size, 1)
    b2c = jnp.asarray(b2, jnp.float32).reshape(action_dim, 1)

    if B <= batch_tile:
        # Overhead-bound regime: whole arrays as single VMEM blocks, no grid,
        # no software pipeline, no double-buffering.
        vmem = pl.BlockSpec(memory_space=pltpu.MemorySpace.VMEM)
        outT = pl.pallas_call(
            _policy_kernel_lanes,
            out_shape=jax.ShapeDtypeStruct((action_dim, B), jnp.float32),
            in_specs=[vmem, vmem, vmem, vmem, vmem],
            out_specs=vmem,
        )(xT, w1t, b1c, w2t, b2c)
        return outT.T

    # Large-batch path: pad batch to a multiple of batch_tile (multiple of
    # 128 lanes) and tile the lane axis. Weights/biases are tiny and stay
    # resident (index_map always (0, 0) -> no re-fetch between steps).
    n_tiles = pl.cdiv(B, batch_tile)
    Bp = n_tiles * batch_tile
    if Bp != B:
        xT = jnp.pad(xT, ((0, 0), (0, Bp - B)))

    outT = pl.pallas_call(
        _policy_kernel_lanes,
        out_shape=jax.ShapeDtypeStruct((action_dim, Bp), jnp.float32),
        grid=(n_tiles,),
        in_specs=[
            pl.BlockSpec((state_dim, batch_tile), lambda i: (0, i)),
            pl.BlockSpec((h_size, state_dim), lambda i: (0, 0)),
            pl.BlockSpec((h_size, 1), lambda i: (0, 0)),
            pl.BlockSpec((action_dim, h_size), lambda i: (0, 0)),
            pl.BlockSpec((action_dim, 1), lambda i: (0, 0)),
        ],
        out_specs=pl.BlockSpec((action_dim, batch_tile), lambda i: (0, i)),
        compiler_params=pltpu.CompilerParams(
            dimension_semantics=("parallel",),  # shards the batch axis across TCs on v7x
        ),
    )(xT, w1t, b1c, w2t, b2c)
    return outT[:, :B].T


def init_params(key, state_dim=4, action_dim=2, h_size=24):
    """Deterministic parameter init (uniform, torch-Linear-like fan_in bound)."""
    k1, k2, k3, k4 = jax.random.split(key, 4)
    bound1 = 1.0 / jnp.sqrt(state_dim)
    bound2 = 1.0 / jnp.sqrt(h_size)
    # Stored as (in_features, out_features): transposed vs torch's (out, in).
    w1 = jax.random.uniform(k1, (state_dim, h_size), jnp.float32, -bound1, bound1)
    b1 = jax.random.uniform(k2, (1, h_size), jnp.float32, -bound1, bound1)
    w2 = jax.random.uniform(k3, (h_size, action_dim), jnp.float32, -bound2, bound2)
    b2 = jax.random.uniform(k4, (1, action_dim), jnp.float32, -bound2, bound2)
    return w1, b1, w2, b2


if __name__ == "__main__":
    key = jax.random.PRNGKey(0)
    key_x, key_p, key_xl = jax.random.split(key, 3)

    batch, state_dim, action_dim, h_size = 2, 4, 2, 24
    w1, b1, w2, b2 = init_params(key_p, state_dim, action_dim, h_size)

    def ref_forward(xx):
        h = jnp.maximum(xx @ w1 + b1, 0.0)
        return jax.nn.softmax(h @ w2 + b2, axis=1)

    # Tolerance is relaxed (vs 1e-5) because the softmax denominator uses the
    # EUP approximate reciprocal; everything else is exact f32.
    TOL = 5e-3

    # 1) Small-batch path: single VMEM block, no grid.
    x = jax.random.normal(key_x, (batch, state_dim), dtype=jnp.float32)
    probs = jax.block_until_ready(policy_forward(x, w1, b1, w2, b2))
    assert probs.shape == (batch, action_dim)
    assert bool(jnp.all(jnp.abs(jnp.sum(probs, axis=1) - 1.0) < TOL))
    assert bool(jnp.all(jnp.abs(probs - ref_forward(x)) < TOL))

    # 2) Large-batch path: batch on lanes, padded + tiled "parallel" grid.
    big_batch = 1000  # not a multiple of the tile -> exercises padding/slice
    x_big = jax.random.normal(key_xl, (big_batch, state_dim), dtype=jnp.float32)
    probs_big = jax.block_until_ready(policy_forward(x_big, w1, b1, w2, b2))
    assert probs_big.shape == (big_batch, action_dim)
    assert bool(jnp.all(jnp.abs(jnp.sum(probs_big, axis=1) - 1.0) < TOL))
    assert bool(jnp.all(jnp.abs(probs_big - ref_forward(x_big)) < TOL))

    print("KERNEL_OK")
</pallas_src>

<mosaic_0001>
module attributes {stable_mosaic.version = 11 : i64} {
  func.func @_policy_kernel_lanes(%arg0: memref<4x2xf32, #tpu.memory_space<vmem>>, %arg1: memref<24x4xf32, #tpu.memory_space<vmem>>, %arg2: memref<24x1xf32, #tpu.memory_space<vmem>>, %arg3: memref<2x24xf32, #tpu.memory_space<vmem>>, %arg4: memref<2x1xf32, #tpu.memory_space<vmem>>, %arg5: memref<2x2xf32, #tpu.memory_space<vmem>>) attributes {dimension_semantics = [], scalar_prefetch = 0 : i64, scratch_operands = 0 : i64, tpu.core_type = #tpu.core_type<tc>} {
    %c0 = arith.constant 0 : index
    %c0_0 = arith.constant 0 : index
    %0 = vector.load %arg0[%c0, %c0_0] : memref<4x2xf32, #tpu.memory_space<vmem>>, vector<4x2xf32>
    %c0_1 = arith.constant 0 : index
    %c0_2 = arith.constant 0 : index
    %1 = vector.load %arg1[%c0_1, %c0_2] : memref<24x4xf32, #tpu.memory_space<vmem>>, vector<24x4xf32>
    %cst = arith.constant dense<0.000000e+00> : vector<24x2xf32>
    %2 = tpu.matmul %1, %0, %cst {dimension_numbers = #tpu.dot_dimension_numbers<[1], [0], [0], [1], [0, 0, 1, 1], [], []>} : vector<24x4xf32>, vector<4x2xf32>, vector<24x2xf32> -> vector<24x2xf32>
    %c0_3 = arith.constant 0 : index
    %c0_4 = arith.constant 0 : index
    %3 = vector.load %arg2[%c0_3, %c0_4] : memref<24x1xf32, #tpu.memory_space<vmem>>, vector<24x1xf32>
    %4 = vector.broadcast %3 : vector<24x1xf32> to vector<24x2xf32>
    %5 = arith.addf %2, %4 : vector<24x2xf32>
    %cst_5 = arith.constant 0.000000e+00 : f32
    %6 = vector.broadcast %cst_5 : f32 to vector<24x2xf32>
    %7 = arith.maximumf %5, %6 : vector<24x2xf32>
    %c0_6 = arith.constant 0 : index
    %c0_7 = arith.constant 0 : index
    %8 = vector.load %arg3[%c0_6, %c0_7] : memref<2x24xf32, #tpu.memory_space<vmem>>, vector<2x24xf32>
    %cst_8 = arith.constant dense<0.000000e+00> : vector<2x2xf32>
    %9 = tpu.matmul %8, %7, %cst_8 {dimension_numbers = #tpu.dot_dimension_numbers<[1], [0], [0], [1], [0, 0, 1, 1], [], []>} : vector<2x24xf32>, vector<24x2xf32>, vector<2x2xf32> -> vector<2x2xf32>
    %c0_9 = arith.constant 0 : index
    %c0_10 = arith.constant 0 : index
    %10 = vector.load %arg4[%c0_9, %c0_10] : memref<2x1xf32, #tpu.memory_space<vmem>>, vector<2x1xf32>
    %11 = vector.broadcast %10 : vector<2x1xf32> to vector<2x2xf32>
    %12 = arith.addf %9, %11 : vector<2x2xf32>
    %cst_11 = arith.constant dense<0xFF800000> : vector<2xf32>
    %13 = vector.multi_reduction <maximumf>, %12, %cst_11 [0] : vector<2x2xf32> to vector<2xf32>
    %14 = vector.shape_cast %13 : vector<2xf32> to vector<1x2xf32>
    %15 = vector.broadcast %14 : vector<1x2xf32> to vector<2x2xf32>
    %16 = arith.subf %12, %15 : vector<2x2xf32>
    %17 = math.exp %16 : vector<2x2xf32>
    %cst_12 = arith.constant dense<0.000000e+00> : vector<2xf32>
    %18 = vector.multi_reduction <add>, %17, %cst_12 [0] : vector<2x2xf32> to vector<2xf32>
    %19 = vector.shape_cast %18 : vector<2xf32> to vector<1x2xf32>
    %20 = tpu.reciprocal %19 {approx = true} : vector<1x2xf32> -> vector<1x2xf32>
    %21 = vector.broadcast %20 : vector<1x2xf32> to vector<2x2xf32>
    %22 = arith.mulf %17, %21 : vector<2x2xf32>
    %c0_13 = arith.constant 0 : index
    %c0_14 = arith.constant 0 : index
    %23 = vector.load %arg5[%c0_13, %c0_14] : memref<2x2xf32, #tpu.memory_space<vmem>>, vector<2x2xf32>
    tpu.vector_store %arg5[%c0_13, %c0_14], %22 {strides = array<i32>} : memref<2x2xf32, #tpu.memory_space<vmem>>, vector<2x2xf32>,
    return
  }
}

</mosaic_0001>

<llo_original>
// kernel: tpu_custom_call.1
$region0: #{tpu_custom_call.1}
  #allocation0 [shape = 'u32[]', space=smem, size = 0x4, offset = 0x4, fixed_abs, tag = 'smem constant byte address 0x4 - core index']
  #allocation1 [shape = 'u32[144,128]{1,0:T(1,128)}', space=vmem, size = 0x12000, scoped, tag = 'internal scratch']
  %s0 = inlined_call_operand.vmem [shape: f32[4,2], index: 0, kind: input, shape index: {}]
  %s1 = inlined_call_operand.vmem [shape: f32[24,4], index: 1, kind: input, shape index: {}]
  %s2 = inlined_call_operand.vmem [shape: f32[24,1], index: 2, kind: input, shape index: {}]
  %s3 = inlined_call_operand.vmem [shape: f32[2,24], index: 3, kind: input, shape index: {}]
  %s4 = inlined_call_operand.vmem [shape: f32[2,1], index: 4, kind: input, shape index: {}]
  %s5 = inlined_call_operand.hbm [shape: f32[2,2], index: 5, kind: output, shape index: {}]
  %s6 = sld [smem:[#allocation0]]
  $region30: #{tpu_custom_call.1} parent=0
    _
  %s8 = ssub.s32 1, %s6
  %s9 = scalar_select 0, %s8, %s6
  $region1: #{tpu_custom_call.1} parent=0
    #allocation2 [shape = 'u8[1024]{0}', space=vmem, size = 0x400, scoped, tag = 'output window, operand 0, single buffered']
    #allocation3 [shape = 's32[1]{0}', space=sflag, size = 0x4, scoped, tag = 'scoped memory for tpu_custom_call.1']
    %10 = vsyncpa [#allocation3], 0
    // Predicated region
    $region2: #{tpu_custom_call.1} parent=1 // pred_check
      _
    $region3: #{tpu_custom_call.1} parent=1 // pred_check_branch
      %12 = sbr.rel (0) target = $region5
    $region4: #{tpu_custom_call.1} parent=1 // pred_region
      _
    $region5: #{tpu_custom_call.1} parent=1 // pred_fallthru
      _
    // Predicated region
    $region6: #{tpu_custom_call.1} parent=1 // pred_check
      _
    $region7: #{tpu_custom_call.1} parent=1 // pred_check_branch
      %14 = sbr.rel (0) target = $region9
    $region8: #{tpu_custom_call.1} parent=1 // pred_region
      _
    $region9: #{tpu_custom_call.1} parent=1 // pred_fallthru
      _
    // Predicated region
    $region10: #{tpu_custom_call.1} parent=1 // pred_check
      _
    $region11: #{tpu_custom_call.1} parent=1 // pred_check_branch
      %16 = sbr.rel (0) target = $region13
    $region12: #{tpu_custom_call.1} parent=1 // pred_region
      _
    $region13: #{tpu_custom_call.1} parent=1 // pred_fallthru
      _
    // Predicated region
    $region14: #{tpu_custom_call.1} parent=1 // pred_check
      _
    $region15: #{tpu_custom_call.1} parent=1 // pred_check_branch
      %18 = sbr.rel (0) target = $region17
    $region16: #{tpu_custom_call.1} parent=1 // pred_region
      _
    $region17: #{tpu_custom_call.1} parent=1 // pred_fallthru
      _
    // Predicated region
    $region18: #{tpu_custom_call.1} parent=1 // pred_check
      _
    $region19: #{tpu_custom_call.1} parent=1 // pred_check_branch
      %20 = sbr.rel (0) target = $region21
    $region20: #{tpu_custom_call.1} parent=1 // pred_region
      _
    $region21: #{tpu_custom_call.1} parent=1 // pred_fallthru
      _
    %v21 = vld [vmem:[%s0] sm:$0xf]
    %v22 = vld [vmem:[%s1] sm:$0xff]
    %v23 = vld [vmem:[%s1 + $0x8] sm:$0xff]
    %v24 = vld [vmem:[%s1 + $0x10] sm:$0xff]
    %v25 = vld [vmem:[%s2] sm:$0xff]
    %v26 = vld [vmem:[%s2 + $0x8] sm:$0xff]
    %v27 = vld [vmem:[%s2 + $0x10] sm:$0xff]
    %29 = vset.pattern.permute.xlu0 0
    %30 = vperm.xlu0 %29, %v25
    %v31 = vpop.permute.xlu0 %30
    %34 = vset.pattern.permute.xlu0 0
    %35 = vperm.xlu0 %34, %v26
    %v36 = vpop.permute.xlu0 %35
    %39 = vset.pattern.permute.xlu0 0
    %40 = vperm.xlu0 %39, %v27
    %v41 = vpop.permute.xlu0 %40
    %vm43 = vcmask 31744
    %v45 = vsel %vm43, %v22, 0
    %v48 = vsel %vm43, %v23, 0
    %v51 = vsel %vm43, %v24, 0
    %vm53 = vcmask 1043456
    %v55 = vsel %vm53, %v21, 0
    %57 = vmatprep.subr.mxu0 0.0
    %58 = vmatpush1.msra.mxu0 %v55
    %59 = vmatprep.subr.mxu0 0.0
    %60 = vmatpush1.msra.mxu0 0.0
    %61 = vmatprep.subr.mxu0 0.0
    %62 = vmatpush1.msra.mxu0 0.0
    %63 = vmatprep.subr.mxu0 0.0
    %64 = vmatpush1.msra.mxu0 0.0
    %65 = vmatprep.subr.mxu0 0.0
    %66 = vmatpush1.msra.mxu0 0.0
    %67 = vmatprep.subr.mxu0 0.0
    %68 = vmatpush1.msra.mxu0 0.0
    %69 = vmatprep.subr.mxu0 0.0
    %70 = vmatpush1.msra.mxu0 0.0
    %71 = vmatprep.subr.mxu0 0.0
    %72 = vmatpush1.msra.mxu0 0.0
    %73 = vmatprep.subr.mxu0 0.0
    %74 = vmatpush1.msra.mxu0 0.0
    %75 = vmatprep.subr.mxu0 0.0
    %76 = vmatpush1.msra.mxu0 0.0
    %77 = vmatprep.subr.mxu0 0.0
    %78 = vmatpush1.msra.mxu0 0.0
    %79 = vmatprep.subr.mxu0 0.0
    %80 = vmatpush1.msra.mxu0 0.0
    %81 = vmatprep.subr.mxu0 0.0
    %82 = vmatpush1.msra.mxu0 0.0
    %83 = vmatprep.subr.mxu0 0.0
    %84 = vmatpush1.msra.mxu0 0.0
    %85 = vmatprep.subr.mxu0 0.0
    %86 = vmatpush1.msra.mxu0 0.0
    %87 = vmatprep.subr.mxu0 0.0
    %88 = vmatpush1.msra.mxu0 0.0
    %89 = vmatprep.subr.mxu0 0.0
    %90 = vmatpush1.msra.mxu0 0.0
    %91 = vmatprep.subr.mxu0 0.0
    %92 = vmatpush1.msra.mxu0 0.0
    %93 = vmatprep.subr.mxu0 0.0
    %94 = vmatpush1.msra.mxu0 0.0
    %95 = vmatprep.subr.mxu0 0.0
    %96 = vmatpush1.msra.mxu0 0.0
    %97 = vmatprep.subr.mxu0 0.0
    %98 = vmatpush1.msra.mxu0 0.0
    %99 = vmatprep.subr.mxu0 0.0
    %100 = vmatpush1.msra.mxu0 0.0
    %101 = vmatprep.subr.mxu0 0.0
    %102 = vmatpush1.msra.mxu0 0.0
    %103 = vmatprep.subr.mxu0 0.0
    %104 = vmatpush1.msra.mxu0 0.0
    %105 = vmatprep.subr.mxu0 0.0
    %106 = vmatpush1.msra.mxu0 0.0
    %107 = vmatprep.subr.mxu0 0.0
    %108 = vmatpush1.msra.mxu0 0.0
    %109 = vmatprep.subr.mxu0 0.0
    %110 = vmatpush1.msra.mxu0 0.0
    %111 = vmatprep.subr.mxu0 0.0
    %112 = vmatpush1.msra.mxu0 0.0
    %113 = vmatprep.subr.mxu0 0.0
    %114 = vmatpush1.msra.mxu0 0.0
    %115 = vmatprep.subr.mxu0 0.0
    %116 = vmatpush1.msra.mxu0 0.0
    %117 = vmatprep.subr.mxu0 0.0
    %118 = vmatpush1.msra.mxu0 0.0
    %119 = vmatprep.subr.mxu0 0.0
    %120 = vmatpush1.msra.mxu0 0.0
    %121 = vmatprep.mubr.f32.mxu0 0.0
    %122 = vmatmul.mubr.f32.gmra.mrb[0].mxu0 %v45
    %v123 = vpop.f32.mrb[0].mxu0
    %v124 = vadd.f32 %v31, %v123
    %v125 = vpop.f32.mrb[0].mxu0
    %126 = vmatprep.mubr.f32.mxu0 0.0
    %127 = vmatmul.mubr.f32.gmra.mrb[0].mxu0 %v48
    %v128 = vpop.f32.mrb[0].mxu0
    %v129 = vadd.f32 %v36, %v128
    %v130 = vpop.f32.mrb[0].mxu0
    %131 = vmatprep.mubr.f32.mxu0 0.0
    %132 = vmatmul.mubr.f32.gmra.mrb[0].mxu0 %v51
    %v133 = vpop.f32.mrb[0].mxu0
    %v134 = vadd.f32 %v41, %v133
    %v135 = vpop.f32.mrb[0].mxu0
    %136 = vdwg.mxu0
    %v137 = vmax.f32 %v124, 0.0
    %v138 = vmax.f32 %v129, 0.0
    %v139 = vmax.f32 %v134, 0.0
    %v140 = vld [vmem:[%s3] sm:$0x3]
    %v141 = vld [vmem:[%s4] sm:$0x3]
    %143 = vset.pattern.permute.xlu0 0
    %144 = vperm.xlu0 %143, %v141
    %v145 = vpop.permute.xlu0 %144
    %vm147 = vcmask 195584
    %v149 = vsel %vm147, %v140, 0
    %151 = vmatprep.subr.mxu0 0.0
    %152 = vmatpush1.msra.mxu0 %v137
    %153 = vmatprep.subr.mxu0 0.0
    %154 = vmatpush1.msra.mxu0 %v138
    %155 = vmatprep.subr.mxu0 0.0
    %156 = vmatpush1.msra.mxu0 %v139
    %157 = vmatprep.subr.mxu0 0.0
    %158 = vmatpush1.msra.mxu0 0.0
    %159 = vmatprep.subr.mxu0 0.0
    %160 = vmatpush1.msra.mxu0 0.0
    %161 = vmatprep.subr.mxu0 0.0
    %162 = vmatpush1.msra.mxu0 0.0
    %163 = vmatprep.subr.mxu0 0.0
    %164 = vmatpush1.msra.mxu0 0.0
    %165 = vmatprep.subr.mxu0 0.0
    %166 = vmatpush1.msra.mxu0 0.0
    %167 = vmatprep.subr.mxu0 0.0
    %168 = vmatpush1.msra.mxu0 0.0
    %169 = vmatprep.subr.mxu0 0.0
    %170 = vmatpush1.msra.mxu0 0.0
    %171 = vmatprep.subr.mxu0 0.0
    %172 = vmatpush1.msra.mxu0 0.0
    %173 = vmatprep.subr.mxu0 0.0
    %174 = vmatpush1.msra.mxu0 0.0
    %175 = vmatprep.subr.mxu0 0.0
    %176 = vmatpush1.msra.mxu0 0.0
    %177 = vmatprep.subr.mxu0 0.0
    %178 = vmatpush1.msra.mxu0 0.0
    %179 = vmatprep.subr.mxu0 0.0
    %180 = vmatpush1.msra.mxu0 0.0
    %181 = vmatprep.subr.mxu0 0.0
    %182 = vmatpush1.msra.mxu0 0.0
    %183 = vmatprep.subr.mxu0 0.0
    %184 = vmatpush1.msra.mxu0 0.0
    %185 = vmatprep.subr.mxu0 0.0
    %186 = vmatpush1.msra.mxu0 0.0
    %187 = vmatprep.subr.mxu0 0.0
    %188 = vmatpush1.msra.mxu0 0.0
    %189 = vmatprep.subr.mxu0 0.0
    %190 = vmatpush1.msra.mxu0 0.0
    %191 = vmatprep.subr.mxu0 0.0
    %192 = vmatpush1.msra.mxu0 0.0
    %193 = vmatprep.subr.mxu0 0.0
    %194 = vmatpush1.msra.mxu0 0.0
    %195 = vmatprep.subr.mxu0 0.0
    %196 = vmatpush1.msra.mxu0 0.0
    %197 = vmatprep.subr.mxu0 0.0
    %198 = vmatpush1.msra.mxu0 0.0
    %199 = vmatprep.subr.mxu0 0.0
    %200 = vmatpush1.msra.mxu0 0.0
    %201 = vmatprep.subr.mxu0 0.0
    %202 = vmatpush1.msra.mxu0 0.0
    %203 = vmatprep.subr.mxu0 0.0
    %204 = vmatpush1.msra.mxu0 0.0
    %205 = vmatprep.subr.mxu0 0.0
    %206 = vmatpush1.msra.mxu0 0.0
    %207 = vmatprep.subr.mxu0 0.0
    %208 = vmatpush1.msra.mxu0 0.0
    %209 = vmatprep.subr.mxu0 0.0
    %210 = vmatpush1.msra.mxu0 0.0
    %211 = vmatprep.subr.mxu0 0.0
    %212 = vmatpush1.msra.mxu0 0.0
    %213 = vmatprep.subr.mxu0 0.0
    %214 = vmatpush1.msra.mxu0 0.0
    %215 = vmatprep.mubr.f32.mxu0 0.0
    %216 = vmatmul.mubr.f32.gmra.mrb[0].mxu0 %v149
    %v217 = vpop.f32.mrb[0].mxu0
    %v218 = vadd.f32 %v145, %v217
    %v219 = vpop.f32.mrb[0].mxu0
    %220 = vdwg.mxu0
    %vm221 = vcmask 9216
    %v222 = vsel %vm221, %v218, -inf
    %v223 = vrot.slane %v222, 4
    %v224 = vmax.f32 %v222, %v223
    %v225 = vrot.slane %v224, 2
    %v226 = vmax.f32 %v224, %v225
    %v227 = vrot.slane %v226, 1
    %v228 = vmax.f32 %v226, %v227
    %v229 = vsub.f32 %v218, %v228
    %v230 = vmul.f32 %v229, 1.442695
    %v231 = vpow.pop %v230
    %v232 = vsel %vm221, %v231, 0.0
    %v233 = vrot.slane %v232, 4
    %v234 = vadd.f32 %v232, %v233
    %v235 = vrot.slane %v234, 2
    %v236 = vadd.f32 %v234, %v235
    %v237 = vrot.slane %v236, 1
    %v238 = vadd.f32 %v236, %v237
    %v239 = vrcp.pop %v238
    %v240 = vmul.f32 %v231, %v239
    %241 = vst.msk [vmem:[#allocation2] sm:$0x3] %vm221, %v240
    // Predicated region
    $region22: #{tpu_custom_call.1} parent=1 // pred_check
      _
    $region23: #{tpu_custom_call.1} parent=1 // pred_check_branch
      %243 = sbr.rel (0) target = $region25
    $region24: #{tpu_custom_call.1} parent=1 // pred_region
      %s245 = ssub.s32 32, 32
      %246 = vsyncadd [#allocation3], %s245
      %s248 = sshll.u32 [#allocation2], 4
      %s249 = int_to_ptr.vmem [resolvable:$true] %s248
      %251 = dma.vmem_to_hbm [thread:$0]  %s249, 32, %s5, [#allocation3]
    $region25: #{tpu_custom_call.1} parent=1 // pred_fallthru
      _
    // Predicated region
    $region26: #{tpu_custom_call.1} parent=1 // pred_check
      _
    $region27: #{tpu_custom_call.1} parent=1 // pred_check_branch
      %253 = sbr.rel (0) target = $region29
    $region28: #{tpu_custom_call.1} parent=1 // pred_region
      %254 = dma.done [#allocation3], 32
    $region29: #{tpu_custom_call.1} parent=1 // pred_fallthru
      _
    %255 = vsyncpa [#allocation3], 1

</llo_original>
